<compile_context>
chip_gen: v7x
topology: tpu7x:2x2x1
jax: 0.10.0
libtpu: 0.0.40
codegen_flags: <defaults>
</compile_context>

<pallas_src>
import functools

import jax
import jax.numpy as jnp
from jax.experimental import pallas as pl
from jax.experimental.pallas import tpu as pltpu

NEG_INF = -1e30


def _ha_output_kernel(qk_ref, d_ref, mask_ref, out_ref):
    """Processes TB batch rows per grid step.

    qk_ref:   (TB, 2, H)   pre-projected queries [q@Ws ; q@We] (D's dtype)
    d_ref:    (TB, S, H)   document encodings (streamed in their input dtype)
    mask_ref: (TB, S)      float mask (nonzero = keep)
    out_ref:  (TB, 2, S)   stacked [log_p1 ; log_p2], f32
    """
    qk = qk_ref[...]
    d = d_ref[...]

    # scores[b, k, s] = sum_h qk[b, k, h] * D[b, s, h]  -> (TB, 2, S), f32 acc.
    scores = jax.lax.dot_general(
        qk, d,
        dimension_numbers=(((2,), (2,)), ((0,), (0,))),
        preferred_element_type=jnp.float32)

    # masked log-softmax (mask semantics identical to mask*x + (1-mask)*-1e30
    # for 0/1 masks, but cheaper: no mults, no (1-mask) temporary).
    keep = (mask_ref[...] != 0)[:, None, :]              # (TB, 1, S)
    masked = jnp.where(keep, scores, NEG_INF)            # (TB, 2, S)

    m = jnp.max(masked, axis=-1, keepdims=True)
    shifted = masked - m
    lse = jnp.log(jnp.sum(jnp.exp(shifted), axis=-1, keepdims=True))
    out_ref[...] = shifted - lse


@functools.partial(jax.jit, static_argnames=("rows_per_step",))
def ha_output_forward(q, D, mask, w_fused, rows_per_step=8):
    """q: (B, H) or (B, 1, H); D: (B, S, H) (any float dtype, bf16 recommended);
    mask: (B, S); w_fused: (H, 2H) = concat([Ws, We], axis=1).

    Returns (log_p1, log_p2), each (B, S) float32.
    """
    if q.ndim == 3:
        q = q.reshape(q.shape[0], q.shape[-1])
    B, S, H = D.shape

    # Tiny (B,H)x(H,2H) projection done once by XLA in f32, then cast to the
    # streaming dtype so the score matmul is a single clean MXU pass.
    qk = jnp.dot(q.astype(jnp.float32), w_fused.astype(jnp.float32),
                 preferred_element_type=jnp.float32)
    qk = qk.reshape(B, 2, H).astype(D.dtype)

    TB = min(rows_per_step, B)
    grid = (pl.cdiv(B, TB),)

    # VMEM budget: double-buffered blocks + headroom (keeps v7x's 64 MiB in
    # mind; raise further on v6e/v5e only if blocks grow).
    dsize = jnp.dtype(D.dtype).itemsize
    block_bytes = 2 * (TB * 2 * H * dsize        # qk
                       + TB * S * H * dsize      # D
                       + TB * S * 4              # mask (f32)
                       + TB * 2 * S * 4)         # out (f32)
    vmem_limit = int(min(96 * 1024 * 1024,
                         max(32 * 1024 * 1024, 3 * block_bytes)))

    out = pl.pallas_call(
        _ha_output_kernel,
        out_shape=jax.ShapeDtypeStruct((B, 2, S), jnp.float32),
        grid=grid,
        in_specs=[
            pl.BlockSpec((TB, 2, H), lambda b: (b, 0, 0)),   # qk
            pl.BlockSpec((TB, S, H), lambda b: (b, 0, 0)),   # D (no pad/cast)
            pl.BlockSpec((TB, S), lambda b: (b, 0)),         # mask
        ],
        out_specs=pl.BlockSpec((TB, 2, S), lambda b: (b, 0, 0)),
        compiler_params=pltpu.CompilerParams(
            dimension_semantics=("parallel",),
            vmem_limit_bytes=vmem_limit),
    )(qk, D, mask.astype(jnp.float32))

    return out[:, 0, :], out[:, 1, :]


def _masked_log_softmax(logits, mask):
    maskf = mask.astype(jnp.float32)
    masked = maskf * logits + (1.0 - maskf) * NEG_INF
    m = jnp.max(masked, axis=-1, keepdims=True)
    shifted = masked - m
    return shifted - jnp.log(jnp.sum(jnp.exp(shifted), axis=-1, keepdims=True))


def reference_forward(q, D, mask, Ws, We):
    """Pure-JAX reference matching the PyTorch forward (f32 math)."""
    qf, Df = q.astype(jnp.float32), D.astype(jnp.float32)
    ms = jnp.einsum('bh,bsh->bs', qf @ Ws, Df)
    me = jnp.einsum('bh,bsh->bs', qf @ We, Df)
    return _masked_log_softmax(ms, mask), _masked_log_softmax(me, mask)


if __name__ == "__main__":
    key = jax.random.PRNGKey(0)
    k_q, k_d, k_ws, k_we = jax.random.split(key, 4)

    batch, seq_len, hidden = 2, 12, 32

    q = jax.random.normal(k_q, (batch, hidden), jnp.float32)
    D = jax.random.normal(k_d, (batch, seq_len, hidden), jnp.float32)

    # xavier_uniform_ init for the two (hidden, hidden) weight matrices.
    bound = (6.0 / (hidden + hidden)) ** 0.5
    Ws = jax.random.uniform(k_ws, (hidden, hidden), jnp.float32, -bound, bound)
    We = jax.random.uniform(k_we, (hidden, hidden), jnp.float32, -bound, bound)
    # Fuse once outside the per-call jit (static parameters).
    w_fused = jnp.concatenate([Ws, We], axis=1)          # (H, 2H)

    # mask: batch 0 fully valid, batch 1 has a padded tail.
    lengths = jnp.array([seq_len, 7], dtype=jnp.int32)
    mask = (jnp.arange(seq_len)[None, :] < lengths[:, None]).astype(jnp.float32)

    # ---- f32 streaming path (exact check against the reference) ----
    log_p1, log_p2 = ha_output_forward(q, D, mask, w_fused)
    log_p1, log_p2 = jax.block_until_ready((log_p1, log_p2))

    ref_p1, ref_p2 = reference_forward(q, D, mask, Ws, We)
    assert log_p1.shape == (batch, seq_len) and log_p2.shape == (batch, seq_len)
    assert jnp.allclose(log_p1, ref_p1, atol=2e-4, rtol=2e-4), \
        f"log_p1 max abs err {jnp.max(jnp.abs(log_p1 - ref_p1))}"
    assert jnp.allclose(log_p2, ref_p2, atol=2e-4, rtol=2e-4), \
        f"log_p2 max abs err {jnp.max(jnp.abs(log_p2 - ref_p2))}"
    assert jnp.allclose(jnp.sum(jnp.exp(log_p1) * mask, axis=-1), 1.0, atol=1e-4)
    assert jnp.allclose(jnp.sum(jnp.exp(log_p2) * mask, axis=-1), 1.0, atol=1e-4)

    # ---- bf16 streaming path (the bandwidth-optimized production path) ----
    D_bf16 = D.astype(jnp.bfloat16)
    b_p1, b_p2 = ha_output_forward(q, D_bf16, mask, w_fused)
    b_p1, b_p2 = jax.block_until_ready((b_p1, b_p2))

    # reference with the same bf16 rounding of the matmul inputs, f32 math.
    qk_bf = (q @ w_fused).astype(jnp.bfloat16).astype(jnp.float32)
    Df = D_bf16.astype(jnp.float32)
    ms_bf = jnp.einsum('bh,bsh->bs', qk_bf[:, :hidden], Df)
    me_bf = jnp.einsum('bh,bsh->bs', qk_bf[:, hidden:], Df)
    rb_p1 = _masked_log_softmax(ms_bf, mask)
    rb_p2 = _masked_log_softmax(me_bf, mask)
    assert jnp.allclose(b_p1, rb_p1, atol=2e-3, rtol=2e-3), \
        f"bf16 log_p1 max abs err {jnp.max(jnp.abs(b_p1 - rb_p1))}"
    assert jnp.allclose(b_p2, rb_p2, atol=2e-3, rtol=2e-3), \
        f"bf16 log_p2 max abs err {jnp.max(jnp.abs(b_p2 - rb_p2))}"
    assert jnp.allclose(jnp.sum(jnp.exp(b_p1) * mask, axis=-1), 1.0, atol=1e-3)
    assert jnp.allclose(jnp.sum(jnp.exp(b_p2) * mask, axis=-1), 1.0, atol=1e-3)

    print("KERNEL_OK")
</pallas_src>

<mosaic_0001>
module attributes {stable_mosaic.version = 11 : i64} {
  func.func @_ha_output_kernel(%arg0: i32, %arg1: memref<2x2x32xf32, #tpu.memory_space<vmem>>, %arg2: memref<2x12x32xf32, #tpu.memory_space<vmem>>, %arg3: memref<2x12xf32, #tpu.memory_space<vmem>>, %arg4: memref<2x2x12xf32, #tpu.memory_space<vmem>>) attributes {dimension_semantics = [#tpu.dimension_semantics<parallel>], iteration_bounds = array<i64: 1>, scalar_prefetch = 0 : i64, scratch_operands = 0 : i64, tpu.core_type = #tpu.core_type<tc>, window_params = [{transform_indices = @transform_0, window_bounds = array<i64: 2, 2, 32>}, {transform_indices = @transform_1, window_bounds = array<i64: 2, 12, 32>}, {transform_indices = @transform_2, window_bounds = array<i64: 2, 12>}, {transform_indices = @transform_3, window_bounds = array<i64: 2, 2, 12>}]} {
    %c0 = arith.constant 0 : index
    %c0_0 = arith.constant 0 : index
    %c0_1 = arith.constant 0 : index
    %0 = vector.load %arg1[%c0, %c0_0, %c0_1] : memref<2x2x32xf32, #tpu.memory_space<vmem>>, vector<2x2x32xf32>
    %c0_2 = arith.constant 0 : index
    %c0_3 = arith.constant 0 : index
    %c0_4 = arith.constant 0 : index
    %1 = vector.load %arg2[%c0_2, %c0_3, %c0_4] : memref<2x12x32xf32, #tpu.memory_space<vmem>>, vector<2x12x32xf32>
    %cst = arith.constant dense<0.000000e+00> : vector<2x2x12xf32>
    %2 = tpu.matmul %0, %1, %cst {dimension_numbers = #tpu.dot_dimension_numbers<[2], [2], [1], [1], [0, 0, 0, 1, 1, 1], [0], [0]>} : vector<2x2x32xf32>, vector<2x12x32xf32>, vector<2x2x12xf32> -> vector<2x2x12xf32>
    %c0_5 = arith.constant 0 : index
    %c0_6 = arith.constant 0 : index
    %3 = vector.load %arg3[%c0_5, %c0_6] : memref<2x12xf32, #tpu.memory_space<vmem>>, vector<2x12xf32>
    %cst_7 = arith.constant 0.000000e+00 : f32
    %4 = vector.broadcast %cst_7 : f32 to vector<2x12xf32>
    %5 = arith.cmpf one, %3, %4 : vector<2x12xf32>
    %6 = vector.shape_cast %5 : vector<2x12xi1> to vector<2x1x12xi1>
    %cst_8 = arith.constant -1.000000e+30 : f32
    %7 = vector.shape_cast %6 : vector<2x1x12xi1> to vector<2x1x12xi1>
    %8 = vector.broadcast %7 : vector<2x1x12xi1> to vector<2x2x12xi1>
    %9 = vector.broadcast %cst_8 : f32 to vector<2x2x12xf32>
    %10 = arith.select %8, %2, %9 : vector<2x2x12xi1>, vector<2x2x12xf32>
    %cst_9 = arith.constant dense<0xFF800000> : vector<2x2xf32>
    %11 = vector.multi_reduction <maximumf>, %10, %cst_9 [2] : vector<2x2x12xf32> to vector<2x2xf32>
    %12 = vector.shape_cast %11 : vector<2x2xf32> to vector<2x2x1xf32>
    %13 = vector.broadcast %12 : vector<2x2x1xf32> to vector<2x2x12xf32>
    %14 = arith.subf %10, %13 : vector<2x2x12xf32>
    %15 = math.exp %14 : vector<2x2x12xf32>
    %cst_10 = arith.constant dense<0.000000e+00> : vector<2x2xf32>
    %16 = vector.multi_reduction <add>, %15, %cst_10 [2] : vector<2x2x12xf32> to vector<2x2xf32>
    %17 = vector.shape_cast %16 : vector<2x2xf32> to vector<2x2x1xf32>
    %18 = math.log %17 : vector<2x2x1xf32>
    %19 = vector.broadcast %18 : vector<2x2x1xf32> to vector<2x2x12xf32>
    %20 = arith.subf %14, %19 : vector<2x2x12xf32>
    %c0_11 = arith.constant 0 : index
    %c0_12 = arith.constant 0 : index
    %c0_13 = arith.constant 0 : index
    %21 = vector.load %arg4[%c0_11, %c0_12, %c0_13] : memref<2x2x12xf32, #tpu.memory_space<vmem>>, vector<2x2x12xf32>
    tpu.vector_store %arg4[%c0_11, %c0_12, %c0_13], %20 {strides = array<i32>} : memref<2x2x12xf32, #tpu.memory_space<vmem>>, vector<2x2x12xf32>,
    return
  }
  func.func @transform_0(%arg0: i32) -> (i32, i32, i32) {
    %c0_i32 = arith.constant 0 : i32
    %c0_i32_0 = arith.constant 0 : i32
    %c0_i32_1 = arith.constant 0 : i32
    return %arg0, %c0_i32, %c0_i32_0 : i32, i32, i32
  }
  func.func @transform_1(%arg0: i32) -> (i32, i32, i32) {
    %c0_i32 = arith.constant 0 : i32
    %c0_i32_0 = arith.constant 0 : i32
    %c0_i32_1 = arith.constant 0 : i32
    return %arg0, %c0_i32, %c0_i32_0 : i32, i32, i32
  }
  func.func @transform_2(%arg0: i32) -> (i32, i32) {
    %c0_i32 = arith.constant 0 : i32
    %c0_i32_0 = arith.constant 0 : i32
    return %arg0, %c0_i32 : i32, i32
  }
  func.func @transform_3(%arg0: i32) -> (i32, i32, i32) {
    %c0_i32 = arith.constant 0 : i32
    %c0_i32_0 = arith.constant 0 : i32
    %c0_i32_1 = arith.constant 0 : i32
    return %arg0, %c0_i32, %c0_i32_0 : i32, i32, i32
  }
}

</mosaic_0001>

<llo_original>
// kernel: ha_output_forward.1
$region0: #{ha_output_forward.1}
  #allocation0 [shape = 'u32[]', space=smem, size = 0x4, offset = 0x4, fixed_abs, tag = 'smem constant byte address 0x4 - core index']
  #allocation1 [shape = 'u32[144,128]{1,0:T(1,128)}', space=vmem, size = 0x12000, scoped, tag = 'internal scratch']
  %s0 = inlined_call_operand.vmem [shape: f32[2,2,32], index: 0, kind: input, shape index: {}]
  %s1 = inlined_call_operand.vmem [shape: f32[2,12,32], index: 1, kind: input, shape index: {}]
  %s2 = inlined_call_operand.vmem [shape: f32[2,12], index: 2, kind: input, shape index: {}]
  %s3 = inlined_call_operand.vmem [shape: f32[2,2,12], index: 3, kind: output, shape index: {}]
  %s4 = sld [smem:[#allocation0]]
  $region22: #{ha_output_forward.1} parent=0
    _
  %s6 = ssub.s32 1, %s4
  %s7 = scalar_select 0, %s6, %s4
  // Predicated region
  $region2: #{ha_output_forward.1} parent=0 // pred_check
    _
  $region3: #{ha_output_forward.1} parent=0 // pred_check_branch
    %9 = sbr.rel (0) target = $region5
  $region4: #{ha_output_forward.1} parent=0 // pred_region
    _
  $region5: #{ha_output_forward.1} parent=0 // pred_fallthru
    _
  // Predicated region
  $region6: #{ha_output_forward.1} parent=0 // pred_check
    _
  $region7: #{ha_output_forward.1} parent=0 // pred_check_branch
    %11 = sbr.rel (0) target = $region9
  $region8: #{ha_output_forward.1} parent=0 // pred_region
    _
  $region9: #{ha_output_forward.1} parent=0 // pred_fallthru
    _
  // Predicated region
  $region10: #{ha_output_forward.1} parent=0 // pred_check
    _
  $region11: #{ha_output_forward.1} parent=0 // pred_check_branch
    %13 = sbr.rel (0) target = $region13
  $region12: #{ha_output_forward.1} parent=0 // pred_region
    _
  $region13: #{ha_output_forward.1} parent=0 // pred_fallthru
    _
  %v14 = vld [vmem:[%s0] sm:$0x3]
  %v15 = vld [vmem:[%s0 + $0x2] sm:$0x3]
  %v16 = vld [vmem:[%s1] sm:$0xff]
  %v17 = vld [vmem:[%s1 + $0x8] sm:$0xf]
  %v18 = vld [vmem:[%s1 + $0x10] sm:$0xff]
  %v19 = vld [vmem:[%s1 + $0x18] sm:$0xf]
  %vm20 = vcmask 261120
  %v22 = vsel %vm20, %v14, 0
  %v25 = vsel %vm20, %v16, 0
  %v28 = vsel %vm20, %v17, 0
  %30 = vmatprep.subr.mxu0 0.0
  %31 = vmatpush1.xpose.msra.mxu0 %v25
  %32 = vmatprep.subr.mxu0 0.0
  %33 = vmatpush1.xpose.msra.mxu0 %v28
  %34 = vmatprep.subr.mxu0 0.0
  %35 = vmatpush1.xpose.msra.mxu0 0.0
  %36 = vmatprep.subr.mxu0 0.0
  %37 = vmatpush1.xpose.msra.mxu0 0.0
  %38 = vmatprep.subr.mxu0 0.0
  %39 = vmatpush1.xpose.msra.mxu0 0.0
  %40 = vmatprep.subr.mxu0 0.0
  %41 = vmatpush1.xpose.msra.mxu0 0.0
  %42 = vmatprep.subr.mxu0 0.0
  %43 = vmatpush1.xpose.msra.mxu0 0.0
  %44 = vmatprep.subr.mxu0 0.0
  %45 = vmatpush1.xpose.msra.mxu0 0.0
  %46 = vmatprep.subr.mxu0 0.0
  %47 = vmatpush1.xpose.msra.mxu0 0.0
  %48 = vmatprep.subr.mxu0 0.0
  %49 = vmatpush1.xpose.msra.mxu0 0.0
  %50 = vmatprep.subr.mxu0 0.0
  %51 = vmatpush1.xpose.msra.mxu0 0.0
  %52 = vmatprep.subr.mxu0 0.0
  %53 = vmatpush1.xpose.msra.mxu0 0.0
  %54 = vmatprep.subr.mxu0 0.0
  %55 = vmatpush1.xpose.msra.mxu0 0.0
  %56 = vmatprep.subr.mxu0 0.0
  %57 = vmatpush1.xpose.msra.mxu0 0.0
  %58 = vmatprep.subr.mxu0 0.0
  %59 = vmatpush1.xpose.msra.mxu0 0.0
  %60 = vmatprep.subr.mxu0 0.0
  %61 = vmatpush1.xpose.msra.mxu0 0.0
  %62 = vmatprep.subr.mxu0 0.0
  %63 = vmatpush1.xpose.msra.mxu0 0.0
  %64 = vmatprep.subr.mxu0 0.0
  %65 = vmatpush1.xpose.msra.mxu0 0.0
  %66 = vmatprep.subr.mxu0 0.0
  %67 = vmatpush1.xpose.msra.mxu0 0.0
  %68 = vmatprep.subr.mxu0 0.0
  %69 = vmatpush1.xpose.msra.mxu0 0.0
  %70 = vmatprep.subr.mxu0 0.0
  %71 = vmatpush1.xpose.msra.mxu0 0.0
  %72 = vmatprep.subr.mxu0 0.0
  %73 = vmatpush1.xpose.msra.mxu0 0.0
  %74 = vmatprep.subr.mxu0 0.0
  %75 = vmatpush1.xpose.msra.mxu0 0.0
  %76 = vmatprep.subr.mxu0 0.0
  %77 = vmatpush1.xpose.msra.mxu0 0.0
  %78 = vmatprep.subr.mxu0 0.0
  %79 = vmatpush1.xpose.msra.mxu0 0.0
  %80 = vmatprep.subr.mxu0 0.0
  %81 = vmatpush1.xpose.msra.mxu0 0.0
  %82 = vmatprep.subr.mxu0 0.0
  %83 = vmatpush1.xpose.msra.mxu0 0.0
  %84 = vmatprep.subr.mxu0 0.0
  %85 = vmatpush1.xpose.msra.mxu0 0.0
  %86 = vmatprep.subr.mxu0 0.0
  %87 = vmatpush1.xpose.msra.mxu0 0.0
  %88 = vmatprep.subr.mxu0 0.0
  %89 = vmatpush1.xpose.msra.mxu0 0.0
  %90 = vmatprep.subr.mxu0 0.0
  %91 = vmatpush1.xpose.msra.mxu0 0.0
  %92 = vmatprep.subr.mxu0 0.0
  %93 = vmatpush1.xpose.msra.mxu0 0.0
  %94 = vmatprep.mubr.f32.mxu0 0.0
  %95 = vmatmul.mubr.f32.gmra.mrb[0].mxu0 %v22
  %v96 = vpop.f32.mrb[0].mxu0
  %v97 = vadd.f32 0.0, %v96
  %v98 = vpop.f32.mrb[0].mxu0
  %99 = vdwg.mxu0
  %v101 = vsel %vm20, %v15, 0
  %v104 = vsel %vm20, %v18, 0
  %v107 = vsel %vm20, %v19, 0
  %109 = vmatprep.subr.mxu0 0.0
  %110 = vmatpush1.xpose.msra.mxu0 %v104
  %111 = vmatprep.subr.mxu0 0.0
  %112 = vmatpush1.xpose.msra.mxu0 %v107
  %113 = vmatprep.subr.mxu0 0.0
  %114 = vmatpush1.xpose.msra.mxu0 0.0
  %115 = vmatprep.subr.mxu0 0.0
  %116 = vmatpush1.xpose.msra.mxu0 0.0
  %117 = vmatprep.subr.mxu0 0.0
  %118 = vmatpush1.xpose.msra.mxu0 0.0
  %119 = vmatprep.subr.mxu0 0.0
  %120 = vmatpush1.xpose.msra.mxu0 0.0
  %121 = vmatprep.subr.mxu0 0.0
  %122 = vmatpush1.xpose.msra.mxu0 0.0
  %123 = vmatprep.subr.mxu0 0.0
  %124 = vmatpush1.xpose.msra.mxu0 0.0
  %125 = vmatprep.subr.mxu0 0.0
  %126 = vmatpush1.xpose.msra.mxu0 0.0
  %127 = vmatprep.subr.mxu0 0.0
  %128 = vmatpush1.xpose.msra.mxu0 0.0
  %129 = vmatprep.subr.mxu0 0.0
  %130 = vmatpush1.xpose.msra.mxu0 0.0
  %131 = vmatprep.subr.mxu0 0.0
  %132 = vmatpush1.xpose.msra.mxu0 0.0
  %133 = vmatprep.subr.mxu0 0.0
  %134 = vmatpush1.xpose.msra.mxu0 0.0
  %135 = vmatprep.subr.mxu0 0.0
  %136 = vmatpush1.xpose.msra.mxu0 0.0
  %137 = vmatprep.subr.mxu0 0.0
  %138 = vmatpush1.xpose.msra.mxu0 0.0
  %139 = vmatprep.subr.mxu0 0.0
  %140 = vmatpush1.xpose.msra.mxu0 0.0
  %141 = vmatprep.subr.mxu0 0.0
  %142 = vmatpush1.xpose.msra.mxu0 0.0
  %143 = vmatprep.subr.mxu0 0.0
  %144 = vmatpush1.xpose.msra.mxu0 0.0
  %145 = vmatprep.subr.mxu0 0.0
  %146 = vmatpush1.xpose.msra.mxu0 0.0
  %147 = vmatprep.subr.mxu0 0.0
  %148 = vmatpush1.xpose.msra.mxu0 0.0
  %149 = vmatprep.subr.mxu0 0.0
  %150 = vmatpush1.xpose.msra.mxu0 0.0
  %151 = vmatprep.subr.mxu0 0.0
  %152 = vmatpush1.xpose.msra.mxu0 0.0
  %153 = vmatprep.subr.mxu0 0.0
  %154 = vmatpush1.xpose.msra.mxu0 0.0
  %155 = vmatprep.subr.mxu0 0.0
  %156 = vmatpush1.xpose.msra.mxu0 0.0
  %157 = vmatprep.subr.mxu0 0.0
  %158 = vmatpush1.xpose.msra.mxu0 0.0
  %159 = vmatprep.subr.mxu0 0.0
  %160 = vmatpush1.xpose.msra.mxu0 0.0
  %161 = vmatprep.subr.mxu0 0.0
  %162 = vmatpush1.xpose.msra.mxu0 0.0
  %163 = vmatprep.subr.mxu0 0.0
  %164 = vmatpush1.xpose.msra.mxu0 0.0
  %165 = vmatprep.subr.mxu0 0.0
  %166 = vmatpush1.xpose.msra.mxu0 0.0
  %167 = vmatprep.subr.mxu0 0.0
  %168 = vmatpush1.xpose.msra.mxu0 0.0
  %169 = vmatprep.subr.mxu0 0.0
  %170 = vmatpush1.xpose.msra.mxu0 0.0
  %171 = vmatprep.subr.mxu0 0.0
  %172 = vmatpush1.xpose.msra.mxu0 0.0
  %173 = vmatprep.mubr.f32.mxu0 0.0
  %174 = vmatmul.mubr.f32.gmra.mrb[0].mxu0 %v101
  %v175 = vpop.f32.mrb[0].mxu0
  %v176 = vadd.f32 0.0, %v175
  %v177 = vpop.f32.mrb[0].mxu0
  %178 = vdwg.mxu0
  %v179 = vld [vmem:[%s2] sm:$0x3]
  %vm180 = vcmp.ne.f32.partialorder %v179, 0.0
  %v181 = vsel %vm180, 1, 0
  %v183 = vunpack.c.l.s4 1966171168
  %v184 = vunpack.c.0.s8 %v183
  %v185 = vlaneseq
  %v186 = vshrl.u32 %v185, 7
  %v187 = vsub.s32 %v184, %v186
  %v188 = vrot.slane %v181, %v187
  %v189 = vcombine.high %v188, %v188
  %v191 = vunpack.c.l.s4 1966171168
  %v192 = vunpack.c.0.s8 %v191
  %v193 = vlaneseq
  %v194 = vshrl.u32 %v193, 7
  %v195 = vsub.s32 %v192, %v194
  %v196 = vrot.slane %v188, %v195
  %v198 = vunpack.c.l.s4 1966171168
  %v199 = vunpack.c.0.s8 %v198
  %v200 = vlaneseq
  %v201 = vshrl.u32 %v200, 7
  %v202 = vsub.s32 %v199, %v201
  %v203 = vrot.slane %v189, %v202
  %vm204 = vcmp.ne.s32.totalorder %v196, 0
  %vm205 = vcmp.ne.s32.totalorder %v203, 0
  %v206 = vsel %vm204, 1, 0
  %v207 = vsel %vm205, 1, 0
  %v208 = vlaneseq
  %v209 = vshrl.u32 %v208, 7
  %v210 = vsub.s32 0, %v209
  %v211 = vrot.slane %v206, %v210
  %v212 = vlaneseq
  %v213 = vshrl.u32 %v212, 7
  %v214 = vsub.s32 0, %v213
  %v215 = vrot.slane %v207, %v214
  %vm216 = vcmp.eq.s32.totalorder %v211, 1
  %vm217 = vcmp.eq.s32.totalorder %v215, 1
  %v218 = vsel %vm216, %v97, -1e+30
  %v219 = vsel %vm217, %v176, -1e+30
  %vm220 = vcmask 91136
  %v221 = vsel %vm220, %v218, -inf
  %222 = vmax.xlane.f32.xlu0 %v221
  %v223 = vpop.xlane.xlu0 %222
  %v224 = vsel %vm220, %v219, -inf
  %225 = vmax.xlane.f32.xlu0 %v224
  %v226 = vpop.xlane.xlu0 %225
  %v227 = vsub.f32 %v218, %v223
  %v228 = vsub.f32 %v219, %v226
  %v229 = vmul.f32 %v227, 1.442695
  %v230 = vpow.pop %v229
  %v231 = vmul.f32 %v228, 1.442695
  %v232 = vpow.pop %v231
  %v233 = vsel %vm220, %v230, 0.0
  %234 = vadd.xlane.f32.xlu0 %v233
  %v235 = vpop.xlane.xlu0 %234
  %v236 = vsel %vm220, %v232, 0.0
  %237 = vadd.xlane.f32.xlu0 %v236
  %v238 = vpop.xlane.xlu0 %237
  %v239 = vlog2.pop %v235
  %v240 = vmul.f32 %v239, 0.6931472
  %v241 = vlog2.pop %v238
  %v242 = vmul.f32 %v241, 0.6931472
  %v243 = vsub.f32 %v227, %v240
  %v244 = vsub.f32 %v228, %v242
  %245 = vst.msk [vmem:[%s3] sm:$0x3] %vm220, %v243
  %246 = vst.msk [vmem:[%s3 + $0x2] sm:$0x3] %vm220, %v244
  // Predicated region
  $region14: #{ha_output_forward.1} parent=0 // pred_check
    _
  $region15: #{ha_output_forward.1} parent=0 // pred_check_branch
    %248 = sbr.rel (0) target = $region17
  $region16: #{ha_output_forward.1} parent=0 // pred_region
    _
  $region17: #{ha_output_forward.1} parent=0 // pred_fallthru
    _
  // Predicated region
  $region18: #{ha_output_forward.1} parent=0 // pred_check
    _
  $region19: #{ha_output_forward.1} parent=0 // pred_check_branch
    %250 = sbr.rel (0) target = $region21
  $region20: #{ha_output_forward.1} parent=0 // pred_region
    _
  $region21: #{ha_output_forward.1} parent=0 // pred_fallthru
    _

</llo_original>
